<compile_context>
chip_gen: v5e
topology: v5e:2x2
jax: 0.10.0
libtpu: 0.0.40
codegen_flags: <defaults>
</compile_context>

<pallas_src>
import functools
import math

import jax
import jax.numpy as jnp
import numpy as np
from jax.experimental import pallas as pl
from jax.experimental.pallas import tpu as pltpu


def _round_up(n, m):
    return ((n + m - 1) // m) * m


def decision_tree_kernel(x_ref, w_ref, b_ref, label_ref, out_ref, *, depth):
    """One batch tile of the soft decision tree forward (batch on lanes)."""
    n_nodes = 2 ** depth - 1
    tb = x_ref.shape[0]

    x = x_ref[...]            # (TB, F)       input dtype (f32 or bf16)
    w = w_ref[...]            # (n_nodes, F)  grid-invariant

    # f^T = W @ x^T -> (n_nodes, TB): contract the feature dim of both operands
    # (standard NT MXU form, same as flash-attention's QK^T). f32 accumulation.
    f_t = jax.lax.dot_general(
        w, x, dimension_numbers=(((1,), (1,)), ((), ())),
        preferred_element_type=jnp.float32)

    # Per-node routing probabilities; biases are SMEM scalars.
    d_rows = [jax.nn.sigmoid(f_t[i:i + 1, :] + b_ref[i]) for i in range(n_nodes)]

    # set_mu recursion unrolled at trace time; leaves visited left-to-right in
    # the same order as torch.cat in DecisionTree.set_mu. Instead of building
    # l=(TB, 2**depth) and doing a cross-lane reduce, accumulate
    # r = sum_k mu_k * tanh(pi_k) directly as a lane-dense (1, TB) row.
    def rec(prob, node, cur, leaf):
        if cur == depth:
            return prob * label_ref[leaf], leaf + 1
        left, leaf = rec(prob * d_rows[node], 2 * node + 1, cur + 1, leaf)
        right, leaf = rec(prob * (1.0 - d_rows[node]), 2 * node + 2, cur + 1, leaf)
        return left + right, leaf

    ones = jnp.ones((1, tb), jnp.float32)
    r, _ = rec(ones, 0, 0, 0)            # (1, TB)
    out_ref[...] = r


def decision_tree_forward(x, f_linear, f_bias, pi, depth, *, block_b=2048,
                          compute_dtype=None):
    """Layout glue + pallas_call. Returns (out (B,1) f32, pred (B,1) int32)."""
    B, F = x.shape
    n_nodes = 2 ** depth - 1
    n_leaves = 2 ** depth
    if compute_dtype is None:
        compute_dtype = x.dtype   # pass bf16 x/w on v6e/v7x to halve HBM read bytes

    tb = min(block_b, _round_up(B, 128))        # batch tile (lane-aligned)
    b_pad = _round_up(B, tb)
    num_tiles = b_pad // tb

    x_p = x.astype(compute_dtype)
    if b_pad != B:
        x_p = jnp.pad(x_p, ((0, b_pad - B), (0, 0)))

    w = f_linear.astype(compute_dtype)                          # (n_nodes, F)
    bias = f_bias.astype(jnp.float32).reshape(n_nodes)          # SMEM scalars
    label = jnp.tanh(pi.astype(jnp.float32)).reshape(n_leaves)  # hoisted tanh(pi)

    kernel = functools.partial(decision_tree_kernel, depth=depth)
    smem = pl.BlockSpec(memory_space=pltpu.MemorySpace.SMEM)

    out_row = pl.pallas_call(
        kernel,
        out_shape=jax.ShapeDtypeStruct((1, b_pad), jnp.float32),
        grid=(num_tiles,),
        in_specs=[
            pl.BlockSpec((tb, F), lambda i: (i, 0)),        # x: batch-tiled
            pl.BlockSpec((n_nodes, F), lambda i: (0, 0)),   # W: grid-invariant
            smem,                                           # f_bias scalars
            smem,                                           # tanh(pi) scalars
        ],
        out_specs=pl.BlockSpec((1, tb), lambda i: (0, i)),  # lane-dense output
        compiler_params=pltpu.CompilerParams(
            dimension_semantics=("parallel",)),             # megacore on v7x
    )(x_p, w, bias, label)

    r = out_row.reshape(b_pad, 1)[:B]            # self.out  (B, 1) f32
    pred = jnp.sign(r).astype(jnp.int32)         # self.pred (B, 1) int32
    return r, pred


def init_params(key, depth, n_features):
    """Deterministic parameter init mirroring DecisionTree.init_f shapes.

    xavier_normal_ std = sqrt(2 / (fan_in + fan_out)); biases are zeros.
    """
    n_nodes = 2 ** depth - 1
    n_leaves = 2 ** depth
    k_w, k_pi = jax.random.split(key)

    std_w = math.sqrt(2.0 / (n_features + n_nodes))
    f_linear = std_w * jax.random.normal(k_w, (n_nodes, n_features), jnp.float32)
    f_bias = jnp.zeros((n_nodes,), jnp.float32)

    std_pi = math.sqrt(2.0 / (1 + n_leaves))
    pi = std_pi * jax.random.normal(k_pi, (1, n_leaves), jnp.float32)

    # TODO(synk): f_mask is built in init_f but never applied in forward(); omitted.
    return f_linear, f_bias, pi


def _leaf_probs_ref(d, depth):
    """Plain-JAX set_mu recursion (batch-major) for the reference."""
    def rec(d_, i, cur):
        if cur == depth:
            return [d_]
        di = d[:, i:i + 1]
        return (rec(d_ * di, 2 * i + 1, cur + 1)
                + rec(d_ * (1.0 - di), 2 * i + 2, cur + 1))

    leaves = rec(jnp.ones((d.shape[0], 1), d.dtype), 0, 0)
    return jnp.concatenate(leaves, axis=1)


def _reference_forward(x, f_linear, f_bias, pi, depth):
    f = x @ f_linear.T + f_bias
    d = jax.nn.sigmoid(f)
    l = _leaf_probs_ref(d, depth)
    r = l @ jnp.tanh(pi).T
    return r, jnp.sign(r).astype(jnp.int32)


if __name__ == "__main__":
    depth = 2
    F = 32

    key = jax.random.PRNGKey(0)
    k_x, k_x2, k_p = jax.random.split(key, 3)
    f_linear, f_bias, pi = init_params(k_p, depth, F)

    # Small case (single grid step, padded batch).
    B = 8
    x = jax.random.normal(k_x, (B, F), jnp.float32)
    out, pred = decision_tree_forward(x, f_linear, f_bias, pi, depth)
    out = jax.block_until_ready(out)
    pred = jax.block_until_ready(pred)
    ref_out, ref_pred = _reference_forward(x, f_linear, f_bias, pi, depth)
    assert out.shape == (B, 1) and pred.shape == (B, 1) and pred.dtype == jnp.int32
    np.testing.assert_allclose(np.asarray(out), np.asarray(ref_out),
                               rtol=1e-5, atol=1e-5)
    np.testing.assert_array_equal(np.asarray(pred), np.asarray(ref_pred))

    # Multi-tile case (exercises the batch grid + ragged-tail padding).
    B2 = 300
    x2 = jax.random.normal(k_x2, (B2, F), jnp.float32)
    out2, pred2 = decision_tree_forward(x2, f_linear, f_bias, pi, depth,
                                        block_b=128)
    out2 = jax.block_until_ready(out2)
    pred2 = jax.block_until_ready(pred2)
    ref_out2, ref_pred2 = _reference_forward(x2, f_linear, f_bias, pi, depth)
    assert out2.shape == (B2, 1) and pred2.shape == (B2, 1)
    np.testing.assert_allclose(np.asarray(out2), np.asarray(ref_out2),
                               rtol=1e-5, atol=1e-5)
    np.testing.assert_array_equal(np.asarray(pred2), np.asarray(ref_pred2))

    print("KERNEL_OK")
</pallas_src>

<mosaic_0001>
module attributes {stable_mosaic.version = 11 : i64} {
  func.func @decision_tree_kernel(%arg0: i32, %arg1: memref<128x32xf32, #tpu.memory_space<vmem>>, %arg2: memref<3x32xf32, #tpu.memory_space<vmem>>, %arg3: memref<3xf32, #tpu.memory_space<smem>>, %arg4: memref<4xf32, #tpu.memory_space<smem>>, %arg5: memref<1x128xf32, #tpu.memory_space<vmem>>) attributes {dimension_semantics = [#tpu.dimension_semantics<parallel>], iteration_bounds = array<i64: 1>, scalar_prefetch = 0 : i64, scratch_operands = 0 : i64, tpu.core_type = #tpu.core_type<tc>, window_params = [{transform_indices = @transform_0, window_bounds = array<i64: 128, 32>}, {pipeline_mode = #tpu.pipeline_mode<synchronous>, transform_indices = @transform_1, window_bounds = array<i64: 3, 32>}, {transform_indices = @transform_2, window_bounds = array<i64: 3>}, {transform_indices = @transform_3, window_bounds = array<i64: 4>}, {transform_indices = @transform_4, window_bounds = array<i64: 1, 128>}]} {
    %c0 = arith.constant 0 : index
    %c0_0 = arith.constant 0 : index
    %0 = vector.load %arg1[%c0, %c0_0] : memref<128x32xf32, #tpu.memory_space<vmem>>, vector<128x32xf32>
    %c0_1 = arith.constant 0 : index
    %c0_2 = arith.constant 0 : index
    %1 = vector.load %arg2[%c0_1, %c0_2] : memref<3x32xf32, #tpu.memory_space<vmem>>, vector<3x32xf32>
    %cst = arith.constant dense<0.000000e+00> : vector<3x128xf32>
    %2 = tpu.matmul %1, %0, %cst {dimension_numbers = #tpu.dot_dimension_numbers<[1], [1], [0], [0], [0, 0, 1, 0], [], []>} : vector<3x32xf32>, vector<128x32xf32>, vector<3x128xf32> -> vector<3x128xf32>
    %3 = vector.extract_strided_slice %2 {offsets = [0, 0], sizes = [1, 128], strides = [1, 1]} : vector<3x128xf32> to vector<1x128xf32>
    %c0_3 = arith.constant 0 : index
    %4 = memref.load %arg3[%c0_3] : memref<3xf32, #tpu.memory_space<smem>>
    %5 = vector.broadcast %4 : f32 to vector<1x128xf32>
    %6 = arith.addf %3, %5 : vector<1x128xf32>
    %7 = arith.negf %6 : vector<1x128xf32>
    %8 = math.exp %7 : vector<1x128xf32>
    %cst_4 = arith.constant 1.000000e+00 : f32
    %9 = vector.broadcast %cst_4 : f32 to vector<1x128xf32>
    %10 = arith.addf %9, %8 : vector<1x128xf32>
    %11 = arith.divf %9, %10 : vector<1x128xf32>
    %12 = vector.extract_strided_slice %2 {offsets = [1, 0], sizes = [1, 128], strides = [1, 1]} : vector<3x128xf32> to vector<1x128xf32>
    %c1 = arith.constant 1 : index
    %13 = memref.load %arg3[%c1] : memref<3xf32, #tpu.memory_space<smem>>
    %14 = vector.broadcast %13 : f32 to vector<1x128xf32>
    %15 = arith.addf %12, %14 : vector<1x128xf32>
    %16 = arith.negf %15 : vector<1x128xf32>
    %17 = math.exp %16 : vector<1x128xf32>
    %cst_5 = arith.constant 1.000000e+00 : f32
    %18 = vector.broadcast %cst_5 : f32 to vector<1x128xf32>
    %19 = arith.addf %18, %17 : vector<1x128xf32>
    %20 = arith.divf %18, %19 : vector<1x128xf32>
    %21 = vector.extract_strided_slice %2 {offsets = [2, 0], sizes = [1, 128], strides = [1, 1]} : vector<3x128xf32> to vector<1x128xf32>
    %c2 = arith.constant 2 : index
    %22 = memref.load %arg3[%c2] : memref<3xf32, #tpu.memory_space<smem>>
    %23 = vector.broadcast %22 : f32 to vector<1x128xf32>
    %24 = arith.addf %21, %23 : vector<1x128xf32>
    %25 = arith.negf %24 : vector<1x128xf32>
    %26 = math.exp %25 : vector<1x128xf32>
    %cst_6 = arith.constant 1.000000e+00 : f32
    %27 = vector.broadcast %cst_6 : f32 to vector<1x128xf32>
    %28 = arith.addf %27, %26 : vector<1x128xf32>
    %29 = arith.divf %27, %28 : vector<1x128xf32>
    %cst_7 = arith.constant 1.000000e+00 : f32
    %30 = vector.broadcast %cst_7 : f32 to vector<1x128xf32>
    %31 = arith.mulf %30, %11 : vector<1x128xf32>
    %32 = arith.mulf %31, %20 : vector<1x128xf32>
    %c0_8 = arith.constant 0 : index
    %33 = memref.load %arg4[%c0_8] : memref<4xf32, #tpu.memory_space<smem>>
    %34 = vector.broadcast %33 : f32 to vector<1x128xf32>
    %35 = arith.mulf %32, %34 : vector<1x128xf32>
    %cst_9 = arith.constant 1.000000e+00 : f32
    %36 = vector.broadcast %cst_9 : f32 to vector<1x128xf32>
    %37 = arith.subf %36, %20 : vector<1x128xf32>
    %38 = arith.mulf %31, %37 : vector<1x128xf32>
    %c1_10 = arith.constant 1 : index
    %39 = memref.load %arg4[%c1_10] : memref<4xf32, #tpu.memory_space<smem>>
    %40 = vector.broadcast %39 : f32 to vector<1x128xf32>
    %41 = arith.mulf %38, %40 : vector<1x128xf32>
    %42 = arith.addf %35, %41 : vector<1x128xf32>
    %cst_11 = arith.constant 1.000000e+00 : f32
    %43 = vector.broadcast %cst_11 : f32 to vector<1x128xf32>
    %44 = arith.subf %43, %11 : vector<1x128xf32>
    %45 = arith.mulf %30, %44 : vector<1x128xf32>
    %46 = arith.mulf %45, %29 : vector<1x128xf32>
    %c2_12 = arith.constant 2 : index
    %47 = memref.load %arg4[%c2_12] : memref<4xf32, #tpu.memory_space<smem>>
    %48 = vector.broadcast %47 : f32 to vector<1x128xf32>
    %49 = arith.mulf %46, %48 : vector<1x128xf32>
    %cst_13 = arith.constant 1.000000e+00 : f32
    %50 = vector.broadcast %cst_13 : f32 to vector<1x128xf32>
    %51 = arith.subf %50, %29 : vector<1x128xf32>
    %52 = arith.mulf %45, %51 : vector<1x128xf32>
    %c3 = arith.constant 3 : index
    %53 = memref.load %arg4[%c3] : memref<4xf32, #tpu.memory_space<smem>>
    %54 = vector.broadcast %53 : f32 to vector<1x128xf32>
    %55 = arith.mulf %52, %54 : vector<1x128xf32>
    %56 = arith.addf %49, %55 : vector<1x128xf32>
    %57 = arith.addf %42, %56 : vector<1x128xf32>
    %c0_14 = arith.constant 0 : index
    %c0_15 = arith.constant 0 : index
    %58 = vector.load %arg5[%c0_14, %c0_15] : memref<1x128xf32, #tpu.memory_space<vmem>>, vector<1x128xf32>
    tpu.vector_store %arg5[%c0_14, %c0_15], %57 {strides = array<i32>} : memref<1x128xf32, #tpu.memory_space<vmem>>, vector<1x128xf32>,
    return
  }
  func.func @transform_0(%arg0: i32) -> (i32, i32) {
    %c0_i32 = arith.constant 0 : i32
    %c0_i32_0 = arith.constant 0 : i32
    return %arg0, %c0_i32 : i32, i32
  }
  func.func @transform_1(%arg0: i32) -> (i32, i32) {
    %c0_i32 = arith.constant 0 : i32
    %c0_i32_0 = arith.constant 0 : i32
    %c0_i32_1 = arith.constant 0 : i32
    return %c0_i32, %c0_i32_0 : i32, i32
  }
  func.func @transform_2(%arg0: i32) -> i32 {
    %c0_i32 = arith.constant 0 : i32
    %c0_i32_0 = arith.constant 0 : i32
    return %c0_i32 : i32
  }
  func.func @transform_3(%arg0: i32) -> i32 {
    %c0_i32 = arith.constant 0 : i32
    %c0_i32_0 = arith.constant 0 : i32
    return %c0_i32 : i32
  }
  func.func @transform_4(%arg0: i32) -> (i32, i32) {
    %c0_i32 = arith.constant 0 : i32
    %c0_i32_0 = arith.constant 0 : i32
    return %c0_i32, %arg0 : i32, i32
  }
}

</mosaic_0001>

<llo_original>
// kernel: tpu_custom_call.1
$region0: #{tpu_custom_call.1}
  #allocation0 [shape = 'u32[]', space=smem, size = 0x4, offset = 0x4, fixed_abs, tag = 'smem constant byte address 0x4 - core index']
  #allocation1 [shape = 'u32[72,128]{1,0:T(1,128)}', space=vmem, size = 0x9000, scoped, tag = 'internal scratch']
  %s0 = inlined_call_operand.vmem [shape: f32[128,32], index: 0, kind: input, shape index: {}]
  %s1 = inlined_call_operand.vmem [shape: f32[3,32], index: 1, kind: input, shape index: {}]
  %s2 = inlined_call_operand.vmem [shape: f32[3], index: 2, kind: input, shape index: {}]
  %s3 = inlined_call_operand.vmem [shape: f32[4], index: 3, kind: input, shape index: {}]
  %s4 = inlined_call_operand.hbm [shape: f32[1,128], index: 4, kind: output, shape index: {}]
  %s5 = sld [smem:[#allocation0]]
  $region34: #{tpu_custom_call.1} parent=0
    _
  %s7 = ssub.s32 1, %s5
  %s8 = scalar_select 0, %s7, %s5
  $region1: #{tpu_custom_call.1} parent=0
    #allocation2 [shape = 'u8[512]{0}', space=smem, size = 0x200, scoped, tag = 'input window, operand 2, single buffered']
    #allocation3 [shape = 's32[1]{0}', space=sflag, size = 0x4, scoped, tag = 'scoped memory for tpu_custom_call.1']
    #allocation4 [shape = 's32[1]{0}', space=sflag, size = 0x4, scoped, tag = 'scoped memory for tpu_custom_call.1']
    #allocation5 [shape = 'u8[512]{0}', space=smem, size = 0x200, scoped, tag = 'input window, operand 3, single buffered']
    #allocation6 [shape = 's32[1]{0}', space=sflag, size = 0x4, scoped, tag = 'scoped memory for tpu_custom_call.1']
    #allocation7 [shape = 'u8[512]{0}', space=vmem, size = 0x400, scoped, tag = 'output window, operand 0, single buffered']
    %9 = vsyncpa [#allocation4], 0
    %10 = vsyncpa [#allocation6], 0
    %11 = vsyncpa [#allocation3], 0
    // Predicated region
    $region2: #{tpu_custom_call.1} parent=1 // pred_check
      _
    $region3: #{tpu_custom_call.1} parent=1 // pred_check_branch
      %13 = sbr.rel (0) target = $region5
    $region4: #{tpu_custom_call.1} parent=1 // pred_region
      _
    $region5: #{tpu_custom_call.1} parent=1 // pred_fallthru
      _
    // Predicated region
    $region6: #{tpu_custom_call.1} parent=1 // pred_check
      _
    $region7: #{tpu_custom_call.1} parent=1 // pred_check_branch
      %15 = sbr.rel (0) target = $region9
    $region8: #{tpu_custom_call.1} parent=1 // pred_region
      _
    $region9: #{tpu_custom_call.1} parent=1 // pred_fallthru
      _
    // Predicated region
    $region10: #{tpu_custom_call.1} parent=1 // pred_check
      _
    $region11: #{tpu_custom_call.1} parent=1 // pred_check_branch
      %17 = sbr.rel (0) target = $region13
    $region12: #{tpu_custom_call.1} parent=1 // pred_region
      %19 = vsyncadd [#allocation4], 0
      %s21 = sshll.u32 %s2, 4
      %s22 = int_to_ptr.vmem [resolvable:$true] %s21
      %24 = dma.vmem_to_smem %s22, 16, [#allocation2], [#allocation4]
    $region13: #{tpu_custom_call.1} parent=1 // pred_fallthru
      _
    // Predicated region
    $region14: #{tpu_custom_call.1} parent=1 // pred_check
      _
    $region15: #{tpu_custom_call.1} parent=1 // pred_check_branch
      %26 = sbr.rel (0) target = $region17
    $region16: #{tpu_custom_call.1} parent=1 // pred_region
      %28 = vsyncadd [#allocation6], 0
      %s30 = sshll.u32 %s3, 4
      %s31 = int_to_ptr.vmem [resolvable:$true] %s30
      %33 = dma.vmem_to_smem %s31, 16, [#allocation5], [#allocation6]
    $region17: #{tpu_custom_call.1} parent=1 // pred_fallthru
      _
    // Predicated region
    $region18: #{tpu_custom_call.1} parent=1 // pred_check
      _
    $region19: #{tpu_custom_call.1} parent=1 // pred_check_branch
      %35 = sbr.rel (0) target = $region21
    $region20: #{tpu_custom_call.1} parent=1 // pred_region
      %37 = dma.done [#allocation4], 16
    $region21: #{tpu_custom_call.1} parent=1 // pred_fallthru
      _
    // Predicated region
    $region22: #{tpu_custom_call.1} parent=1 // pred_check
      _
    $region23: #{tpu_custom_call.1} parent=1 // pred_check_branch
      %39 = sbr.rel (0) target = $region25
    $region24: #{tpu_custom_call.1} parent=1 // pred_region
      %41 = dma.done [#allocation6], 16
    $region25: #{tpu_custom_call.1} parent=1 // pred_fallthru
      _
    %42 = sfence
    %v43 = vld [vmem:[%s0] sm:$0xff]
    %v44 = vld [vmem:[%s0 + $0x8] sm:$0xff]
    %v45 = vld [vmem:[%s0 + $0x10] sm:$0xff]
    %v46 = vld [vmem:[%s0 + $0x18] sm:$0xff]
    %v47 = vld [vmem:[%s0 + $0x20] sm:$0xff]
    %v48 = vld [vmem:[%s0 + $0x28] sm:$0xff]
    %v49 = vld [vmem:[%s0 + $0x30] sm:$0xff]
    %v50 = vld [vmem:[%s0 + $0x38] sm:$0xff]
    %v51 = vld [vmem:[%s0 + $0x40] sm:$0xff]
    %v52 = vld [vmem:[%s0 + $0x48] sm:$0xff]
    %v53 = vld [vmem:[%s0 + $0x50] sm:$0xff]
    %v54 = vld [vmem:[%s0 + $0x58] sm:$0xff]
    %v55 = vld [vmem:[%s0 + $0x60] sm:$0xff]
    %v56 = vld [vmem:[%s0 + $0x68] sm:$0xff]
    %v57 = vld [vmem:[%s0 + $0x70] sm:$0xff]
    %v58 = vld [vmem:[%s0 + $0x78] sm:$0xff]
    %v59 = vld [vmem:[%s1] sm:$0x7]
    %vm60 = vcmask 261120
    %v62 = vsel %vm60, %v59, 0
    %v65 = vsel %vm60, %v43, 0
    %v68 = vsel %vm60, %v44, 0
    %v71 = vsel %vm60, %v45, 0
    %v74 = vsel %vm60, %v46, 0
    %v77 = vsel %vm60, %v47, 0
    %v80 = vsel %vm60, %v48, 0
    %v83 = vsel %vm60, %v49, 0
    %v86 = vsel %vm60, %v50, 0
    %v89 = vsel %vm60, %v51, 0
    %v92 = vsel %vm60, %v52, 0
    %v95 = vsel %vm60, %v53, 0
    %v98 = vsel %vm60, %v54, 0
    %v101 = vsel %vm60, %v55, 0
    %v104 = vsel %vm60, %v56, 0
    %v107 = vsel %vm60, %v57, 0
    %v110 = vsel %vm60, %v58, 0
    %112 = vmatpush.xpose.msra.mxu0 %v110
    %113 = vmatpush.xpose.msra.mxu0 %v107
    %114 = vmatpush.xpose.msra.mxu0 %v104
    %115 = vmatpush.xpose.msra.mxu0 %v101
    %116 = vmatpush.xpose.msra.mxu0 %v98
    %117 = vmatpush.xpose.msra.mxu0 %v95
    %118 = vmatpush.xpose.msra.mxu0 %v92
    %119 = vmatpush.xpose.msra.mxu0 %v89
    %120 = vmatpush.xpose.msra.mxu0 %v86
    %121 = vmatpush.xpose.msra.mxu0 %v83
    %122 = vmatpush.xpose.msra.mxu0 %v80
    %123 = vmatpush.xpose.msra.mxu0 %v77
    %124 = vmatpush.xpose.msra.mxu0 %v74
    %125 = vmatpush.xpose.msra.mxu0 %v71
    %126 = vmatpush.xpose.msra.mxu0 %v68
    %127 = vmatpush.xpose.msra.mxu0 %v65
    %128 = vmatmul.f32.gmra.mxu0 %v62
    %v129 = vpop.f32.mrf.mxu0
    %v130 = vadd.f32 0.0, %v129
    %131 = vdwg.mxu0
    %s132 = sld [smem:[#allocation2]]
    %v133 = vstv %s132
    %v134 = vadd.f32 %v130, %v133
    %v135 = vxor.u32 %v134, 2147483648
    %v136 = vmul.f32 %v135, 1.442695
    %v137 = vpow.pop %v136
    %v138 = vadd.f32 %v137, 1.0
    %v139 = vrcp.pop %v138
    %v140 = vmul.f32 %v138, %v139
    %v141 = vsub.f32 1.0, %v140
    %v142 = vmul.f32 %v139, %v141
    %v143 = vadd.f32 %v139, %v142
    %vm144 = vweird.f32 %v138
    %vm145 = vweird.f32 %v139
    %vm146 = vmor %vm144, %vm145
    %v147 = vsel %vm146, %v139, %v143
    %v148 = vand.u32 2147483647, %v138
    %vm149 = vcmp.eq.f32.partialorder %v148, 8.507059e+37
    %v150 = vand.u32 %v138, 2147483648
    %v151 = vor.u32 1.1754944e-38, %v150
    %v152 = vsel %vm149, %v151, %v147
    %v153 = vmul.f32 1.0, %v152
    %s154 = sld [smem:[#allocation2 + $0x1]]
    %v155 = vstv %s154
    %v156 = vadd.f32 %v130, %v155
    %v157 = vxor.u32 %v156, 2147483648
    %v158 = vmul.f32 %v157, 1.442695
    %v159 = vpow.pop %v158
    %v160 = vadd.f32 %v159, 1.0
    %v161 = vrcp.pop %v160
    %v162 = vmul.f32 %v160, %v161
    %v163 = vsub.f32 1.0, %v162
    %v164 = vmul.f32 %v161, %v163
    %v165 = vadd.f32 %v161, %v164
    %vm166 = vweird.f32 %v160
    %vm167 = vweird.f32 %v161
    %vm168 = vmor %vm166, %vm167
    %v169 = vsel %vm168, %v161, %v165
    %v170 = vand.u32 2147483647, %v160
    %vm171 = vcmp.eq.f32.partialorder %v170, 8.507059e+37
    %v172 = vand.u32 %v160, 2147483648
    %v173 = vor.u32 1.1754944e-38, %v172
    %v174 = vsel %vm171, %v173, %v169
    %v175 = vmul.f32 1.0, %v174
    %s176 = sld [smem:[#allocation2 + $0x2]]
    %v177 = vstv %s176
    %v178 = vadd.f32 %v130, %v177
    %v179 = vxor.u32 %v178, 2147483648
    %v180 = vmul.f32 %v179, 1.442695
    %v181 = vpow.pop %v180
    %v182 = vadd.f32 %v181, 1.0
    %v183 = vrcp.pop %v182
    %v184 = vmul.f32 %v182, %v183
    %v185 = vsub.f32 1.0, %v184
    %v186 = vmul.f32 %v183, %v185
    %v187 = vadd.f32 %v183, %v186
    %vm188 = vweird.f32 %v182
    %vm189 = vweird.f32 %v183
    %vm190 = vmor %vm188, %vm189
    %v191 = vsel %vm190, %v183, %v187
    %v192 = vand.u32 2147483647, %v182
    %vm193 = vcmp.eq.f32.partialorder %v192, 8.507059e+37
    %v194 = vand.u32 %v182, 2147483648
    %v195 = vor.u32 1.1754944e-38, %v194
    %v196 = vsel %vm193, %v195, %v191
    %v197 = vmul.f32 1.0, %v196
    %v199 = vrot.slane %v175, 1
    %v201 = vmul.f32 %v153, %v199
    %s202 = sld [smem:[#allocation5]]
    %v203 = vstv %s202
    %v204 = vmul.f32 %v201, %v203
    %v205 = vsub.f32 1.0, %v175
    %v207 = vrot.slane %v205, 1
    %v209 = vmul.f32 %v153, %v207
    %s210 = sld [smem:[#allocation5 + $0x1]]
    %v211 = vstv %s210
    %v212 = vmul.f32 %v209, %v211
    %v213 = vadd.f32 %v204, %v212
    %v214 = vsub.f32 1.0, %v153
    %v216 = vrot.slane %v197, 2
    %v218 = vmul.f32 %v214, %v216
    %s219 = sld [smem:[#allocation5 + $0x2]]
    %v220 = vstv %s219
    %v221 = vmul.f32 %v218, %v220
    %v222 = vsub.f32 1.0, %v197
    %v224 = vrot.slane %v222, 2
    %v226 = vmul.f32 %v214, %v224
    %s227 = sld [smem:[#allocation5 + $0x3]]
    %v228 = vstv %s227
    %v229 = vmul.f32 %v226, %v228
    %v230 = vadd.f32 %v221, %v229
    %v231 = vadd.f32 %v213, %v230
    %232 = vst [vmem:[#allocation7] sm:$0x1] %v231
    // Predicated region
    $region26: #{tpu_custom_call.1} parent=1 // pred_check
      _
    $region27: #{tpu_custom_call.1} parent=1 // pred_check_branch
      %234 = sbr.rel (0) target = $region29
    $region28: #{tpu_custom_call.1} parent=1 // pred_region
      %236 = vsyncadd [#allocation3], 0
      %s238 = sshll.u32 [#allocation7], 4
      %s239 = int_to_ptr.vmem [resolvable:$true] %s238
      %s240 = sshll.u32 %s4, 4
      %s241 = int_to_ptr.hbm [resolvable:$true] %s240
      %243 = dma.vmem_to_hbm [thread:$0]  %s239, 16, %s241, [#allocation3]
    $region29: #{tpu_custom_call.1} parent=1 // pred_fallthru
      _
    // Predicated region
    $region30: #{tpu_custom_call.1} parent=1 // pred_check
      _
    $region31: #{tpu_custom_call.1} parent=1 // pred_check_branch
      %245 = sbr.rel (0) target = $region33
    $region32: #{tpu_custom_call.1} parent=1 // pred_region
      %247 = dma.done [#allocation3], 16
    $region33: #{tpu_custom_call.1} parent=1 // pred_fallthru
      _
    %248 = vsyncpa [#allocation3], 1
    %249 = vsyncpa [#allocation4], 1
    %250 = vsyncpa [#allocation6], 1

</llo_original>
